<compile_context>
chip_gen: v6e
topology: v6e:2x2x1
jax: 0.10.0
libtpu: 0.0.40
codegen_flags: <defaults>
</compile_context>

<pallas_src>
import functools
import math

import jax
import jax.numpy as jnp
import numpy as np
from jax.experimental import pallas as pl
from jax.experimental.pallas import tpu as pltpu

_LANES = 128
_MAX_TILE_ROWS = 8192          # 4 MiB per f32 input block at the cap


def _round_up(v, m):
    return -(-v // m) * m


def _l1_sum_kernel(x_ref, t_ref, acc_ref, *, tile_r, tiles_per_chunk,
                   rows_valid, needs_mask):
    """Accumulate per-lane partial sums of |x - t| for one chunk.

    x_ref, t_ref : [tile_r, 128]  lane-dense tiles of the flattened inputs
    acc_ref      : [1, 128]       f32 per-chunk accumulator, resident across k
    """
    c = pl.program_id(0)           # parallel chunk axis (megacore on v7x)
    k = pl.program_id(1)           # reduction steps within the chunk

    @pl.when(k == 0)
    def _init():
        acc_ref[...] = jnp.zeros_like(acc_ref)

    x = x_ref[...].astype(jnp.float32)
    t = t_ref[...].astype(jnp.float32)
    diff = x - t

    if needs_mask:
        # Use the UNclamped global tile index: the index_map clamps the DMA so
        # it never reads out-of-bounds blocks; here we zero out (a) rows past
        # the end of the array in the partial last tile and (b) duplicated
        # clamped steps, so neither contributes to the sum.
        tile_idx = c * tiles_per_chunk + k
        row_ids = tile_idx * tile_r + jax.lax.broadcasted_iota(
            jnp.int32, diff.shape, 0)
        diff = jnp.where(row_ids < rows_valid, diff, 0.0)

    # Pure VPU work per step; one cheap sublane reduce into the lane-shaped
    # accumulator.  Cross-lane reduce + mean scale happen outside the kernel.
    acc_ref[...] += jnp.sum(jnp.abs(diff), axis=0, keepdims=True)


def distance_2_target_loss_forward(x, target, *, reduction="mean",
                                    tile_rows=None):
    """Pallas implementation of distance_2_target_loss.forward (L1 loss).

    x      : [B, H, W]  model activations (channel already selected)
    target : [B, H, W]  saved target activations
    returns: scalar f32  mean(|x - target|)  (or sum if reduction == "sum")
    """
    assert x.shape == target.shape, "x and target must have the same shape"
    n = int(math.prod(x.shape))
    assert n > 0

    # Flat, lane-dense view (free for contiguous inputs).
    xf = jnp.ravel(x)
    tf = jnp.ravel(target)
    pad = (-n) % _LANES
    if pad:
        # Rare path: pad by < 128 zeros so the [rows, 128] view exists.
        # Zeros contribute |0 - 0| = 0; the mean divides by the true n.
        xf = jnp.pad(xf, (0, pad))
        tf = jnp.pad(tf, (0, pad))
    rows = (n + pad) // _LANES
    x2 = xf.reshape(rows, _LANES)
    t2 = tf.reshape(rows, _LANES)

    # Dtype-aware sublane rounding: 8 rows for 4-byte, 16 for 2-byte, 32 for
    # 1-byte element types (inputs stay in their own dtype through the DMA).
    min_itemsize = min(jnp.dtype(x.dtype).itemsize,
                       jnp.dtype(target.dtype).itemsize)
    sub = max(8, 32 // max(1, min_itemsize))
    cap = int(tile_rows) if tile_rows is not None else _MAX_TILE_ROWS
    tile_r = min(cap, _round_up(rows, sub))
    if tile_r > rows:
        tile_r = rows          # whole array in one block (full dims are legal)

    total_tiles = -(-rows // tile_r)
    # Two parallel chunks feed both TensorCores on v7x; harmless elsewhere.
    # Only split odd tile counts when the duplicated (clamped) tile is cheap.
    if total_tiles >= 8 or (total_tiles >= 2 and total_tiles % 2 == 0):
        num_chunks = 2
    else:
        num_chunks = 1
    tpc = -(-total_tiles // num_chunks)          # tiles per chunk
    needs_mask = (num_chunks * tpc * tile_r) != rows
    last_tile = total_tiles - 1

    def in_map(c, k):
        # Clamp so the DMA block origin always stays in bounds; duplicated
        # steps are zero-masked in-kernel.
        return (jnp.minimum(c * tpc + k, last_tile), 0)

    kernel = functools.partial(
        _l1_sum_kernel, tile_r=tile_r, tiles_per_chunk=tpc,
        rows_valid=rows, needs_mask=needs_mask)

    bytes_accessed = n * (jnp.dtype(x.dtype).itemsize
                          + jnp.dtype(target.dtype).itemsize) \
        + num_chunks * _LANES * 4

    partials = pl.pallas_call(
        kernel,
        out_shape=jax.ShapeDtypeStruct((num_chunks, _LANES), jnp.float32),
        grid_spec=pltpu.PrefetchScalarGridSpec(
            num_scalar_prefetch=0,
            grid=(num_chunks, tpc),
            in_specs=[
                pl.BlockSpec((tile_r, _LANES), in_map),
                pl.BlockSpec((tile_r, _LANES), in_map),
            ],
            out_specs=pl.BlockSpec((1, _LANES), lambda c, k: (c, 0)),
        ),
        compiler_params=pltpu.CompilerParams(
            # Outer chunk axis parallel (megacore), inner reduction arbitrary.
            dimension_semantics=("parallel", "arbitrary"),
            # 16 MiB of double-buffered input blocks at the 8192-row cap;
            # raise v5e's 16 MiB default so the same tile fits everywhere.
            vmem_limit_bytes=32 * 1024 * 1024,
        ),
        cost_estimate=pl.CostEstimate(
            flops=3 * n, transcendentals=0,
            bytes_accessed=int(bytes_accessed)),
    )(x2, t2)

    total = jnp.sum(partials)                 # tiny cross-lane/chunk reduce
    if reduction == "mean":
        total = total / n
    return total


class Distance2TargetLoss:
    """Minimal mirror of the PyTorch module (default nn.L1Loss only)."""

    def __init__(self, target, reduction="mean"):
        self.target = target
        self.reduction = reduction

    def __call__(self, x):
        return distance_2_target_loss_forward(x, self.target,
                                               reduction=self.reduction)


def _reference(x, target):
    """Plain-JAX reference matching torch nn.L1Loss() (mean reduction)."""
    return jnp.mean(jnp.abs(x.astype(jnp.float32) - target.astype(jnp.float32)))


if __name__ == "__main__":
    key = jax.random.PRNGKey(0)
    kx, kt = jax.random.split(key, 2)

    # 1) Basic case: (batch, H, W) with a 128-aligned element count.
    B, H, W = 2, 16, 16
    x = jax.random.normal(kx, (B, H, W), jnp.float32)
    target = jax.random.normal(kt, (B, H, W), jnp.float32)
    loss_mod = Distance2TargetLoss(target)
    loss = jax.block_until_ready(loss_mod(x))
    np.testing.assert_allclose(np.asarray(loss), np.asarray(_reference(x, target)),
                               rtol=1e-5, atol=1e-6)
    assert loss.shape == ()

    # 2) Non-128-aligned element count (pad-to-lane path).
    x_odd = jax.random.normal(kx, (3, 7, 5), jnp.float32)
    t_odd = jax.random.normal(kt, (3, 7, 5), jnp.float32)
    loss_odd = jax.block_until_ready(distance_2_target_loss_forward(x_odd, t_odd))
    np.testing.assert_allclose(np.asarray(loss_odd),
                               np.asarray(_reference(x_odd, t_odd)),
                               rtol=1e-5, atol=1e-6)

    # 3) Multi-tile path with a small forced tile: exercises the parallel
    #    chunk axis, the clamped duplicated tile, and in-kernel tail masking.
    x_big = jax.random.normal(kx, (9, 32, 32), jnp.float32)
    t_big = jax.random.normal(kt, (9, 32, 32), jnp.float32)
    loss_big = jax.block_until_ready(
        distance_2_target_loss_forward(x_big, t_big, tile_rows=8))
    np.testing.assert_allclose(np.asarray(loss_big),
                               np.asarray(_reference(x_big, t_big)),
                               rtol=1e-5, atol=1e-6)

    print("KERNEL_OK")
</pallas_src>

<mosaic_0001>
module attributes {stable_mosaic.version = 11 : i64} {
  func.func @_l1_sum_kernel(%arg0: i32, %arg1: i32, %arg2: memref<4x128xf32, #tpu.memory_space<vmem>>, %arg3: memref<4x128xf32, #tpu.memory_space<vmem>>, %arg4: memref<1x128xf32, #tpu.memory_space<vmem>>) attributes {dimension_semantics = [#tpu.dimension_semantics<parallel>, #tpu.dimension_semantics<arbitrary>], iteration_bounds = array<i64: 1, 1>, scalar_prefetch = 0 : i64, scratch_operands = 0 : i64, tpu.core_type = #tpu.core_type<tc>, window_params = [{transform_indices = @transform_0, window_bounds = array<i64: 4, 128>}, {transform_indices = @transform_1, window_bounds = array<i64: 4, 128>}, {transform_indices = @transform_2, window_bounds = array<i64: 1, 128>}]} {
    %c0_i32 = arith.constant 0 : i32
    %0 = arith.cmpi eq, %arg1, %c0_i32 : i32
    %1 = arith.extui %0 : i1 to i32
    %c0_i32_0 = arith.constant 0 : i32
    %2 = arith.cmpi ne, %1, %c0_i32_0 : i32
    scf.if %2 {
      %cst_8 = arith.constant 0.000000e+00 : f32
      %12 = vector.broadcast %cst_8 : f32 to vector<1x128xf32>
      %c0_9 = arith.constant 0 : index
      %c0_10 = arith.constant 0 : index
      %13 = vector.load %arg4[%c0_9, %c0_10] : memref<1x128xf32, #tpu.memory_space<vmem>>, vector<1x128xf32>
      tpu.vector_store %arg4[%c0_9, %c0_10], %12 {strides = array<i32>} : memref<1x128xf32, #tpu.memory_space<vmem>>, vector<1x128xf32>,
    } else {
    }
    %c0 = arith.constant 0 : index
    %c0_1 = arith.constant 0 : index
    %3 = vector.load %arg2[%c0, %c0_1] : memref<4x128xf32, #tpu.memory_space<vmem>>, vector<4x128xf32>
    %c0_2 = arith.constant 0 : index
    %c0_3 = arith.constant 0 : index
    %4 = vector.load %arg3[%c0_2, %c0_3] : memref<4x128xf32, #tpu.memory_space<vmem>>, vector<4x128xf32>
    %5 = arith.subf %3, %4 : vector<4x128xf32>
    %c0_4 = arith.constant 0 : index
    %c0_5 = arith.constant 0 : index
    %6 = vector.load %arg4[%c0_4, %c0_5] : memref<1x128xf32, #tpu.memory_space<vmem>>, vector<1x128xf32>
    %7 = math.absf %5 : vector<4x128xf32>
    %cst = arith.constant dense<0.000000e+00> : vector<128xf32>
    %8 = vector.multi_reduction <add>, %7, %cst [0] : vector<4x128xf32> to vector<128xf32>
    %9 = vector.shape_cast %8 : vector<128xf32> to vector<1x128xf32>
    %10 = arith.addf %6, %9 : vector<1x128xf32>
    %c0_6 = arith.constant 0 : index
    %c0_7 = arith.constant 0 : index
    %11 = vector.load %arg4[%c0_6, %c0_7] : memref<1x128xf32, #tpu.memory_space<vmem>>, vector<1x128xf32>
    tpu.vector_store %arg4[%c0_6, %c0_7], %10 {strides = array<i32>} : memref<1x128xf32, #tpu.memory_space<vmem>>, vector<1x128xf32>,
    return
  }
  func.func @transform_0(%arg0: i32, %arg1: i32) -> (i32, i32) {
    %c1_i32 = arith.constant 1 : i32
    %0 = arith.muli %arg0, %c1_i32 : i32
    %1 = arith.addi %0, %arg1 : i32
    %c0_i32 = arith.constant 0 : i32
    %2 = arith.minsi %1, %c0_i32 : i32
    %c0_i32_0 = arith.constant 0 : i32
    %c0_i32_1 = arith.constant 0 : i32
    return %2, %c0_i32_0 : i32, i32
  }
  func.func @transform_1(%arg0: i32, %arg1: i32) -> (i32, i32) {
    %c1_i32 = arith.constant 1 : i32
    %0 = arith.muli %arg0, %c1_i32 : i32
    %1 = arith.addi %0, %arg1 : i32
    %c0_i32 = arith.constant 0 : i32
    %2 = arith.minsi %1, %c0_i32 : i32
    %c0_i32_0 = arith.constant 0 : i32
    %c0_i32_1 = arith.constant 0 : i32
    return %2, %c0_i32_0 : i32, i32
  }
  func.func @transform_2(%arg0: i32, %arg1: i32) -> (i32, i32) {
    %c0_i32 = arith.constant 0 : i32
    %c0_i32_0 = arith.constant 0 : i32
    return %arg0, %c0_i32 : i32, i32
  }
}

</mosaic_0001>

<llo_original>
// kernel: tpu_custom_call.1
$region0: #{tpu_custom_call.1}
  #allocation0 [shape = 'u32[]', space=smem, size = 0x4, offset = 0x4, fixed_abs, tag = 'smem constant byte address 0x4 - core index']
  #allocation1 [shape = 'u32[144,128]{1,0:T(1,128)}', space=vmem, size = 0x12000, scoped, tag = 'internal scratch']
  %s0 = inlined_call_operand.hbm [shape: f32[4,128], index: 0, kind: input, shape index: {}]
  %s1 = inlined_call_operand.hbm [shape: f32[4,128], index: 1, kind: input, shape index: {}]
  %s2 = inlined_call_operand.hbm [shape: f32[1,128], index: 2, kind: output, shape index: {}]
  %s3 = sld [smem:[#allocation0]]
  $region30: #{tpu_custom_call.1} parent=0
    _
  %s5 = ssub.s32 1, %s3
  %s6 = scalar_select 0, %s5, %s3
  $region1: #{tpu_custom_call.1} parent=0
    #allocation2 [shape = 'u8[2048]{0}', space=vmem, size = 0x800, scoped, tag = 'input window, operand 0, single buffered']
    #allocation3 [shape = 's32[1]{0}', space=sflag, size = 0x4, scoped, tag = 'scoped memory for tpu_custom_call.1']
    #allocation4 [shape = 's32[1]{0}', space=sflag, size = 0x4, scoped, tag = 'scoped memory for tpu_custom_call.1']
    #allocation5 [shape = 'u8[2048]{0}', space=vmem, size = 0x800, scoped, tag = 'input window, operand 1, single buffered']
    #allocation6 [shape = 's32[1]{0}', space=sflag, size = 0x4, scoped, tag = 'scoped memory for tpu_custom_call.1']
    #allocation7 [shape = 'u8[512]{0}', space=vmem, size = 0x400, scoped, tag = 'output window, operand 0, single buffered']
    %7 = vsyncpa [#allocation3], 0
    %8 = vsyncpa [#allocation6], 0
    %9 = vsyncpa [#allocation4], 0
    // Predicated region
    $region2: #{tpu_custom_call.1} parent=1 // pred_check
      _
    $region3: #{tpu_custom_call.1} parent=1 // pred_check_branch
      %11 = sbr.rel (0) target = $region5
    $region4: #{tpu_custom_call.1} parent=1 // pred_region
      %s12 = sadd.s32 0, 0
      %p13 = scmp.lt.s32.totalorder %s12, 0
      %s14 = scalar_select %p13, %s12, 0
      %s16 = ssub.s32 64, 64
      %17 = vsyncadd [#allocation3], %s16
      %s18 = smul.addr %s14, 64
      %s19 = scalar_lea.hbm %s0, %s18
      %s21 = sshll.u32 [#allocation2], 4
      %s22 = int_to_ptr.vmem [resolvable:$true] %s21
      %24 = dma.hbm_to_vmem [thread:$0]  %s19, 64, %s22, [#allocation3]
    $region5: #{tpu_custom_call.1} parent=1 // pred_fallthru
      _
    // Predicated region
    $region6: #{tpu_custom_call.1} parent=1 // pred_check
      _
    $region7: #{tpu_custom_call.1} parent=1 // pred_check_branch
      %26 = sbr.rel (0) target = $region9
    $region8: #{tpu_custom_call.1} parent=1 // pred_region
      %s27 = sadd.s32 0, 0
      %p28 = scmp.lt.s32.totalorder %s27, 0
      %s29 = scalar_select %p28, %s27, 0
      %s31 = ssub.s32 64, 64
      %32 = vsyncadd [#allocation6], %s31
      %s33 = smul.addr %s29, 64
      %s34 = scalar_lea.hbm %s1, %s33
      %s36 = sshll.u32 [#allocation5], 4
      %s37 = int_to_ptr.vmem [resolvable:$true] %s36
      %39 = dma.hbm_to_vmem [thread:$0]  %s34, 64, %s37, [#allocation6]
    $region9: #{tpu_custom_call.1} parent=1 // pred_fallthru
      _
    // Predicated region
    $region10: #{tpu_custom_call.1} parent=1 // pred_check
      _
    $region11: #{tpu_custom_call.1} parent=1 // pred_check_branch
      %41 = sbr.rel (0) target = $region13
    $region12: #{tpu_custom_call.1} parent=1 // pred_region
      %42 = dma.done [#allocation3], 64
    $region13: #{tpu_custom_call.1} parent=1 // pred_fallthru
      _
    // Predicated region
    $region14: #{tpu_custom_call.1} parent=1 // pred_check
      _
    $region15: #{tpu_custom_call.1} parent=1 // pred_check_branch
      %44 = sbr.rel (0) target = $region17
    $region16: #{tpu_custom_call.1} parent=1 // pred_region
      %45 = dma.done [#allocation6], 64
    $region17: #{tpu_custom_call.1} parent=1 // pred_fallthru
      _
    %s46 = sadd.s32 0, 0
    %p47 = scmp.lt.s32.totalorder %s46, 0
    %s48 = scalar_select %p47, %s46, 0
    %s49 = sadd.s32 0, 0
    %p50 = scmp.lt.s32.totalorder %s49, 0
    %s51 = scalar_select %p50, %s49, 0
    %p52 = scmp.eq.s32.totalorder 0, 0
    // Predicated region
    $region18: #{tpu_custom_call.1} parent=1 // pred_check
      %p53 = pneg %p52
    $region19: #{tpu_custom_call.1} parent=1 // pred_check_branch
      %55 = sbr.rel (%p53) target = $region21
    $region20: #{tpu_custom_call.1} parent=1 // pred_region
      %56 = vst [vmem:[#allocation7] sm:$0x1] 0.0
    $region21: #{tpu_custom_call.1} parent=1 // pred_fallthru
      _
    %v57 = vld [vmem:[#allocation2] sm:$0xf]
    %v58 = vld [vmem:[#allocation5] sm:$0xf]
    %v59 = vsub.f32 %v57, %v58
    %v60 = vld [vmem:[#allocation7] sm:$0x1]
    %v61 = vand.u32 2147483647, %v59
    %vm62 = vcmask 1043456
    %v63 = vsel %vm62, %v61, 0.0
    %v64 = vrot.slane %v63, 4
    %v65 = vadd.f32 %v63, %v64
    %v66 = vrot.slane %v65, 2
    %v67 = vadd.f32 %v65, %v66
    %v68 = vrot.slane %v67, 1
    %v69 = vadd.f32 %v67, %v68
    %v70 = vadd.f32 %v60, %v69
    %71 = vst [vmem:[#allocation7] sm:$0x1] %v70
    // Predicated region
    $region22: #{tpu_custom_call.1} parent=1 // pred_check
      _
    $region23: #{tpu_custom_call.1} parent=1 // pred_check_branch
      %73 = sbr.rel (0) target = $region25
    $region24: #{tpu_custom_call.1} parent=1 // pred_region
      %s75 = ssub.s32 16, 16
      %76 = vsyncadd [#allocation4], %s75
      %s78 = sshll.u32 [#allocation7], 4
      %s79 = int_to_ptr.vmem [resolvable:$true] %s78
      %81 = dma.vmem_to_hbm [thread:$0]  %s79, 16, %s2, [#allocation4]
    $region25: #{tpu_custom_call.1} parent=1 // pred_fallthru
      _
    // Predicated region
    $region26: #{tpu_custom_call.1} parent=1 // pred_check
      _
    $region27: #{tpu_custom_call.1} parent=1 // pred_check_branch
      %83 = sbr.rel (0) target = $region29
    $region28: #{tpu_custom_call.1} parent=1 // pred_region
      %84 = dma.done [#allocation4], 16
    $region29: #{tpu_custom_call.1} parent=1 // pred_fallthru
      _
    %85 = vsyncpa [#allocation3], 1
    %86 = vsyncpa [#allocation6], 1
    %87 = vsyncpa [#allocation4], 1

</llo_original>
